<compile_context>
chip_gen: v5e
topology: v5e:2x2
jax: 0.10.0
libtpu: 0.0.40
codegen_flags: <defaults>
</compile_context>

<pallas_src>
import math
import functools

import jax
import jax.numpy as jnp
from jax.experimental import pallas as pl
from jax.experimental.pallas import tpu as pltpu


# ---------------------------------------------------------------------------
# Bucket math (wrapper-side, 1-D over diagonal index only).
# ---------------------------------------------------------------------------
def _bucket_1d(m, off, num_buckets, max_distance):
    """T5 relative-position bucket for diagonal index m (rel_pos = j - i = m - off)."""
    rel = m - off                      # j - i
    n_rel = -rel                       # torch: n = -relative_position = i - j
    half = num_buckets // 2
    max_exact = half // 2
    ret = jnp.where(n_rel < 0, half, 0).astype(jnp.int32)
    n_abs = jnp.abs(n_rel)
    is_small = n_abs < max_exact
    val_large = max_exact + (
        jnp.log(jnp.maximum(n_abs, 1).astype(jnp.float32) / max_exact)
        / math.log(max_distance / max_exact) * (half - max_exact)
    ).astype(jnp.int32)
    val_large = jnp.minimum(val_large, half - 1)
    return ret + jnp.where(is_small, n_abs, val_large)


# ---------------------------------------------------------------------------
# Kernel: pure Toeplitz broadcast from the sheared diagonal table.
# ---------------------------------------------------------------------------
def _t5_bias_kernel(a_ref, b_ref, out_ref, *, tile, heads):
    # a_ref, b_ref : (heads, 8, tile) -- two adjacent lane-windows of the sheared table.
    # out_ref      : (heads, tile, tile); out[h, r, c] = diag[h, c - r + const].
    def per_head(h, carry):
        w2 = jnp.concatenate([a_ref[h], b_ref[h]], axis=-1)          # (8, 2*tile), f32
        for g in range(tile // 8):                                    # static unroll
            lo = tile - 8 * g                                         # static slice start
            blk = w2[:, lo:lo + tile]                                 # (8, tile)
            out_ref[h, pl.ds(8 * g, 8), :] = blk.astype(out_ref.dtype)
        return carry
    jax.lax.fori_loop(0, heads, per_head, 0)


# ---------------------------------------------------------------------------
# Wrapper.
# ---------------------------------------------------------------------------
def t5_relative_position_bias(table, n, *, scale=1.0, num_buckets=32,
                              max_distance=128, tile=None, out_dtype=jnp.float32):
    """bias[h, i, j] = scale * table[bucket(j - i), h]  (matches the PyTorch module)."""
    nb_buckets, heads = table.shape
    assert nb_buckets == num_buckets
    assert num_buckets >= 4, "bucket math requires num_buckets >= 4"
    assert max_distance > (num_buckets // 2) // 2, "max_distance too small for log bucket"

    LANE = 128
    if tile is None:
        if n >= 512:
            tile = 512                            # 8 MiB f32 block; ~17 MiB double-buffered
        elif n >= LANE:
            tile = LANE * (n // LANE)             # largest 128-multiple <= n
        else:
            tile = LANE                           # tiny n: compute padded tile, slice after
    assert tile % LANE == 0 and tile % 8 == 0

    n_eff = n if n >= tile else tile              # block shape must not exceed array dims
    nb = -(-n_eff // tile)                        # grid blocks per axis
    off = nb * tile                               # diag index of rel_pos == 0
    lpad = 2 * nb * tile                          # exact multiple of tile

    # ---- tiny O(heads * n) precompute in plain JAX (Toeplitz diag table) ----
    m = jnp.arange(lpad, dtype=jnp.int32)
    bucket = _bucket_1d(m, off, num_buckets, max_distance)                  # (lpad,)
    diag = (table.astype(jnp.float32) * jnp.float32(scale))[bucket]         # (lpad, heads)
    diag = diag.T                                                           # (heads, lpad)
    # 8 sublane-sheared copies: d8[h, s, m] = diag[h, m - s]
    # (roll wrap-around only ever lands in lanes the kernel never reads).
    d8 = jnp.stack([jnp.roll(diag, s, axis=-1) for s in range(8)], axis=1)  # (heads, 8, lpad)

    kernel = functools.partial(_t5_bias_kernel, tile=tile, heads=heads)

    out_block = heads * tile * tile * jnp.dtype(out_dtype).itemsize
    in_block = heads * 8 * tile * 4
    vmem_need = 2 * (out_block + 2 * in_block)            # double-buffered estimate
    vmem_limit = int(min(56 * 2**20, max(32 * 2**20, 2 * vmem_need)))

    out = pl.pallas_call(
        kernel,
        out_shape=jax.ShapeDtypeStruct((heads, n_eff, n_eff), out_dtype),
        grid_spec=pltpu.PrefetchScalarGridSpec(
            num_scalar_prefetch=0,
            grid=(nb, nb),
            in_specs=[
                # Two adjacent tile-wide lane windows of the sheared diag table; the
                # Toeplitz shift is absorbed entirely by the block index (nb + j - i ± 1).
                pl.BlockSpec((heads, 8, tile), lambda i, j: (0, 0, nb + j - i - 1)),
                pl.BlockSpec((heads, 8, tile), lambda i, j: (0, 0, nb + j - i)),
            ],
            out_specs=pl.BlockSpec((heads, tile, tile), lambda i, j: (0, i, j)),
        ),
        compiler_params=pltpu.CompilerParams(
            dimension_semantics=("parallel", "parallel"),
            vmem_limit_bytes=vmem_limit,
        ),
    )(d8, d8)

    if n_eff != n:
        out = out[:, :n, :n]
    return out


# ---------------------------------------------------------------------------
# Pure-JAX reference mirroring the PyTorch forward.
# ---------------------------------------------------------------------------
def t5_relative_position_bias_ref(table, n, *, scale=1.0, num_buckets=32,
                                  max_distance=128):
    pos = jnp.arange(n, dtype=jnp.int32)
    rel_pos = pos[None, :] - pos[:, None]
    n_rel = -rel_pos
    half = num_buckets // 2
    max_exact = half // 2
    ret = jnp.where(n_rel < 0, half, 0).astype(jnp.int32)
    n_abs = jnp.abs(n_rel)
    is_small = n_abs < max_exact
    val_large = max_exact + (
        jnp.log(jnp.maximum(n_abs, 1).astype(jnp.float32) / max_exact)
        / math.log(max_distance / max_exact) * (half - max_exact)
    ).astype(jnp.int32)
    val_large = jnp.minimum(val_large, half - 1)
    rp_bucket = ret + jnp.where(is_small, n_abs, val_large)
    values = table.astype(jnp.float32)[rp_bucket]        # (n, n, heads)
    return jnp.transpose(values, (2, 0, 1)) * scale      # (heads, n, n)


if __name__ == "__main__":
    key = jax.random.PRNGKey(0)
    num_buckets, heads, max_distance, scale = 32, 8, 128, 0.5
    # The module's only parameter: the relative_attention_bias embedding table.
    table = jax.random.normal(key, (num_buckets, heads), dtype=jnp.float32)

    # Small n (module forward(n)); exercises the padded single-tile path.
    n = 16
    bias = jax.block_until_ready(
        t5_relative_position_bias(table, n, scale=scale,
                                  num_buckets=num_buckets, max_distance=max_distance))
    ref = t5_relative_position_bias_ref(table, n, scale=scale,
                                        num_buckets=num_buckets, max_distance=max_distance)
    assert bias.shape == (heads, n, n), bias.shape
    assert jnp.allclose(bias, ref, atol=1e-6, rtol=1e-6), "mismatch vs reference (n=16)"

    # Multi-tile path: grid 2x2 with partial edge tiles and cross-block diag windows.
    n2 = 200
    bias2 = jax.block_until_ready(
        t5_relative_position_bias(table, n2, scale=scale,
                                  num_buckets=num_buckets, max_distance=max_distance))
    ref2 = t5_relative_position_bias_ref(table, n2, scale=scale,
                                         num_buckets=num_buckets, max_distance=max_distance)
    assert bias2.shape == (heads, n2, n2), bias2.shape
    assert jnp.allclose(bias2, ref2, atol=1e-6, rtol=1e-6), "mismatch vs reference (n=200)"

    print("KERNEL_OK")
</pallas_src>

<mosaic_0001>
module attributes {stable_mosaic.version = 11 : i64} {
  func.func @_t5_bias_kernel(%arg0: i32, %arg1: i32, %arg2: memref<8x8x128xf32, #tpu.memory_space<vmem>>, %arg3: memref<8x8x128xf32, #tpu.memory_space<vmem>>, %arg4: memref<8x128x128xf32, #tpu.memory_space<vmem>>) attributes {dimension_semantics = [#tpu.dimension_semantics<parallel>, #tpu.dimension_semantics<parallel>], iteration_bounds = array<i64: 1, 1>, scalar_prefetch = 0 : i64, scratch_operands = 0 : i64, tpu.core_type = #tpu.core_type<tc>, window_params = [{transform_indices = @transform_0, window_bounds = array<i64: 8, 8, 128>}, {transform_indices = @transform_1, window_bounds = array<i64: 8, 8, 128>}, {transform_indices = @transform_2, window_bounds = array<i64: 8, 128, 128>}]} {
    %c0_i32 = arith.constant 0 : i32
    %c8_i32 = arith.constant 8 : i32
    %0 = arith.addi %c0_i32, %c8_i32 : i32
    %c1_i32 = arith.constant 1 : i32
    scf.for %arg5 = %c0_i32 to %0 step %c1_i32  : i32 {
      %1 = arith.index_cast %arg5 : i32 to index
      %c0 = arith.constant 0 : index
      %c0_1 = arith.constant 0 : index
      %2 = vector.load %arg2[%1, %c0, %c0_1] : memref<8x8x128xf32, #tpu.memory_space<vmem>>, vector<1x8x128xf32>
      %3 = vector.shape_cast %2 : vector<1x8x128xf32> to vector<8x128xf32>
      %4 = arith.index_cast %arg5 : i32 to index
      %c0_2 = arith.constant 0 : index
      %c0_3 = arith.constant 0 : index
      %5 = vector.load %arg3[%4, %c0_2, %c0_3] : memref<8x8x128xf32, #tpu.memory_space<vmem>>, vector<1x8x128xf32>
      %6 = vector.shape_cast %5 : vector<1x8x128xf32> to vector<8x128xf32>
      %7 = tpu.concatenate %3, %6 in 1 : vector<8x128xf32>, vector<8x128xf32> -> vector<8x256xf32>
      %8 = vector.extract_strided_slice %7 {offsets = [0, 128], sizes = [8, 128], strides = [1, 1]} : vector<8x256xf32> to vector<8x128xf32>
      %9 = arith.index_cast %arg5 : i32 to index
      %c0_4 = arith.constant 0 : index
      %c0_5 = arith.constant 0 : index
      %10 = vector.load %arg4[%9, %c0_4, %c0_5] : memref<8x128x128xf32, #tpu.memory_space<vmem>>, vector<1x8x128xf32>
      %11 = vector.shape_cast %10 : vector<1x8x128xf32> to vector<8x128xf32>
      %12 = vector.shape_cast %8 : vector<8x128xf32> to vector<1x8x128xf32>
      tpu.vector_store %arg4[%9, %c0_4, %c0_5], %12 {strides = array<i32>} : memref<8x128x128xf32, #tpu.memory_space<vmem>>, vector<1x8x128xf32>,
      %13 = vector.extract_strided_slice %7 {offsets = [0, 120], sizes = [8, 128], strides = [1, 1]} : vector<8x256xf32> to vector<8x128xf32>
      %14 = arith.index_cast %arg5 : i32 to index
      %c8 = arith.constant 8 : index
      %c0_6 = arith.constant 0 : index
      %15 = vector.load %arg4[%14, %c8, %c0_6] : memref<8x128x128xf32, #tpu.memory_space<vmem>>, vector<1x8x128xf32>
      %16 = vector.shape_cast %15 : vector<1x8x128xf32> to vector<8x128xf32>
      %17 = vector.shape_cast %13 : vector<8x128xf32> to vector<1x8x128xf32>
      tpu.vector_store %arg4[%14, %c8, %c0_6], %17 {strides = array<i32>} : memref<8x128x128xf32, #tpu.memory_space<vmem>>, vector<1x8x128xf32>,
      %18 = vector.extract_strided_slice %7 {offsets = [0, 112], sizes = [8, 128], strides = [1, 1]} : vector<8x256xf32> to vector<8x128xf32>
      %19 = arith.index_cast %arg5 : i32 to index
      %c16 = arith.constant 16 : index
      %c0_7 = arith.constant 0 : index
      %20 = vector.load %arg4[%19, %c16, %c0_7] : memref<8x128x128xf32, #tpu.memory_space<vmem>>, vector<1x8x128xf32>
      %21 = vector.shape_cast %20 : vector<1x8x128xf32> to vector<8x128xf32>
      %22 = vector.shape_cast %18 : vector<8x128xf32> to vector<1x8x128xf32>
      tpu.vector_store %arg4[%19, %c16, %c0_7], %22 {strides = array<i32>} : memref<8x128x128xf32, #tpu.memory_space<vmem>>, vector<1x8x128xf32>,
      %23 = vector.extract_strided_slice %7 {offsets = [0, 104], sizes = [8, 128], strides = [1, 1]} : vector<8x256xf32> to vector<8x128xf32>
      %24 = arith.index_cast %arg5 : i32 to index
      %c24 = arith.constant 24 : index
      %c0_8 = arith.constant 0 : index
      %25 = vector.load %arg4[%24, %c24, %c0_8] : memref<8x128x128xf32, #tpu.memory_space<vmem>>, vector<1x8x128xf32>
      %26 = vector.shape_cast %25 : vector<1x8x128xf32> to vector<8x128xf32>
      %27 = vector.shape_cast %23 : vector<8x128xf32> to vector<1x8x128xf32>
      tpu.vector_store %arg4[%24, %c24, %c0_8], %27 {strides = array<i32>} : memref<8x128x128xf32, #tpu.memory_space<vmem>>, vector<1x8x128xf32>,
      %28 = vector.extract_strided_slice %7 {offsets = [0, 96], sizes = [8, 128], strides = [1, 1]} : vector<8x256xf32> to vector<8x128xf32>
      %29 = arith.index_cast %arg5 : i32 to index
      %c32 = arith.constant 32 : index
      %c0_9 = arith.constant 0 : index
      %30 = vector.load %arg4[%29, %c32, %c0_9] : memref<8x128x128xf32, #tpu.memory_space<vmem>>, vector<1x8x128xf32>
      %31 = vector.shape_cast %30 : vector<1x8x128xf32> to vector<8x128xf32>
      %32 = vector.shape_cast %28 : vector<8x128xf32> to vector<1x8x128xf32>
      tpu.vector_store %arg4[%29, %c32, %c0_9], %32 {strides = array<i32>} : memref<8x128x128xf32, #tpu.memory_space<vmem>>, vector<1x8x128xf32>,
      %33 = vector.extract_strided_slice %7 {offsets = [0, 88], sizes = [8, 128], strides = [1, 1]} : vector<8x256xf32> to vector<8x128xf32>
      %34 = arith.index_cast %arg5 : i32 to index
      %c40 = arith.constant 40 : index
      %c0_10 = arith.constant 0 : index
      %35 = vector.load %arg4[%34, %c40, %c0_10] : memref<8x128x128xf32, #tpu.memory_space<vmem>>, vector<1x8x128xf32>
      %36 = vector.shape_cast %35 : vector<1x8x128xf32> to vector<8x128xf32>
      %37 = vector.shape_cast %33 : vector<8x128xf32> to vector<1x8x128xf32>
      tpu.vector_store %arg4[%34, %c40, %c0_10], %37 {strides = array<i32>} : memref<8x128x128xf32, #tpu.memory_space<vmem>>, vector<1x8x128xf32>,
      %38 = vector.extract_strided_slice %7 {offsets = [0, 80], sizes = [8, 128], strides = [1, 1]} : vector<8x256xf32> to vector<8x128xf32>
      %39 = arith.index_cast %arg5 : i32 to index
      %c48 = arith.constant 48 : index
      %c0_11 = arith.constant 0 : index
      %40 = vector.load %arg4[%39, %c48, %c0_11] : memref<8x128x128xf32, #tpu.memory_space<vmem>>, vector<1x8x128xf32>
      %41 = vector.shape_cast %40 : vector<1x8x128xf32> to vector<8x128xf32>
      %42 = vector.shape_cast %38 : vector<8x128xf32> to vector<1x8x128xf32>
      tpu.vector_store %arg4[%39, %c48, %c0_11], %42 {strides = array<i32>} : memref<8x128x128xf32, #tpu.memory_space<vmem>>, vector<1x8x128xf32>,
      %43 = vector.extract_strided_slice %7 {offsets = [0, 72], sizes = [8, 128], strides = [1, 1]} : vector<8x256xf32> to vector<8x128xf32>
      %44 = arith.index_cast %arg5 : i32 to index
      %c56 = arith.constant 56 : index
      %c0_12 = arith.constant 0 : index
      %45 = vector.load %arg4[%44, %c56, %c0_12] : memref<8x128x128xf32, #tpu.memory_space<vmem>>, vector<1x8x128xf32>
      %46 = vector.shape_cast %45 : vector<1x8x128xf32> to vector<8x128xf32>
      %47 = vector.shape_cast %43 : vector<8x128xf32> to vector<1x8x128xf32>
      tpu.vector_store %arg4[%44, %c56, %c0_12], %47 {strides = array<i32>} : memref<8x128x128xf32, #tpu.memory_space<vmem>>, vector<1x8x128xf32>,
      %48 = vector.extract_strided_slice %7 {offsets = [0, 64], sizes = [8, 128], strides = [1, 1]} : vector<8x256xf32> to vector<8x128xf32>
      %49 = arith.index_cast %arg5 : i32 to index
      %c64 = arith.constant 64 : index
      %c0_13 = arith.constant 0 : index
      %50 = vector.load %arg4[%49, %c64, %c0_13] : memref<8x128x128xf32, #tpu.memory_space<vmem>>, vector<1x8x128xf32>
      %51 = vector.shape_cast %50 : vector<1x8x128xf32> to vector<8x128xf32>
      %52 = vector.shape_cast %48 : vector<8x128xf32> to vector<1x8x128xf32>
      tpu.vector_store %arg4[%49, %c64, %c0_13], %52 {strides = array<i32>} : memref<8x128x128xf32, #tpu.memory_space<vmem>>, vector<1x8x128xf32>,
      %53 = vector.extract_strided_slice %7 {offsets = [0, 56], sizes = [8, 128], strides = [1, 1]} : vector<8x256xf32> to vector<8x128xf32>
      %54 = arith.index_cast %arg5 : i32 to index
      %c72 = arith.constant 72 : index
      %c0_14 = arith.constant 0 : index
      %55 = vector.load %arg4[%54, %c72, %c0_14] : memref<8x128x128xf32, #tpu.memory_space<vmem>>, vector<1x8x128xf32>
      %56 = vector.shape_cast %55 : vector<1x8x128xf32> to vector<8x128xf32>
      %57 = vector.shape_cast %53 : vector<8x128xf32> to vector<1x8x128xf32>
      tpu.vector_store %arg4[%54, %c72, %c0_14], %57 {strides = array<i32>} : memref<8x128x128xf32, #tpu.memory_space<vmem>>, vector<1x8x128xf32>,
      %58 = vector.extract_strided_slice %7 {offsets = [0, 48], sizes = [8, 128], strides = [1, 1]} : vector<8x256xf32> to vector<8x128xf32>
      %59 = arith.index_cast %arg5 : i32 to index
      %c80 = arith.constant 80 : index
      %c0_15 = arith.constant 0 : index
      %60 = vector.load %arg4[%59, %c80, %c0_15] : memref<8x128x128xf32, #tpu.memory_space<vmem>>, vector<1x8x128xf32>
      %61 = vector.shape_cast %60 : vector<1x8x128xf32> to vector<8x128xf32>
      %62 = vector.shape_cast %58 : vector<8x128xf32> to vector<1x8x128xf32>
      tpu.vector_store %arg4[%59, %c80, %c0_15], %62 {strides = array<i32>} : memref<8x128x128xf32, #tpu.memory_space<vmem>>, vector<1x8x128xf32>,
      %63 = vector.extract_strided_slice %7 {offsets = [0, 40], sizes = [8, 128], strides = [1, 1]} : vector<8x256xf32> to vector<8x128xf32>
      %64 = arith.index_cast %arg5 : i32 to index
      %c88 = arith.constant 88 : index
      %c0_16 = arith.constant 0 : index
      %65 = vector.load %arg4[%64, %c88, %c0_16] : memref<8x128x128xf32, #tpu.memory_space<vmem>>, vector<1x8x128xf32>
      %66 = vector.shape_cast %65 : vector<1x8x128xf32> to vector<8x128xf32>
      %67 = vector.shape_cast %63 : vector<8x128xf32> to vector<1x8x128xf32>
      tpu.vector_store %arg4[%64, %c88, %c0_16], %67 {strides = array<i32>} : memref<8x128x128xf32, #tpu.memory_space<vmem>>, vector<1x8x128xf32>,
      %68 = vector.extract_strided_slice %7 {offsets = [0, 32], sizes = [8, 128], strides = [1, 1]} : vector<8x256xf32> to vector<8x128xf32>
      %69 = arith.index_cast %arg5 : i32 to index
      %c96 = arith.constant 96 : index
      %c0_17 = arith.constant 0 : index
      %70 = vector.load %arg4[%69, %c96, %c0_17] : memref<8x128x128xf32, #tpu.memory_space<vmem>>, vector<1x8x128xf32>
      %71 = vector.shape_cast %70 : vector<1x8x128xf32> to vector<8x128xf32>
      %72 = vector.shape_cast %68 : vector<8x128xf32> to vector<1x8x128xf32>
      tpu.vector_store %arg4[%69, %c96, %c0_17], %72 {strides = array<i32>} : memref<8x128x128xf32, #tpu.memory_space<vmem>>, vector<1x8x128xf32>,
      %73 = vector.extract_strided_slice %7 {offsets = [0, 24], sizes = [8, 128], strides = [1, 1]} : vector<8x256xf32> to vector<8x128xf32>
      %74 = arith.index_cast %arg5 : i32 to index
      %c104 = arith.constant 104 : index
      %c0_18 = arith.constant 0 : index
      %75 = vector.load %arg4[%74, %c104, %c0_18] : memref<8x128x128xf32, #tpu.memory_space<vmem>>, vector<1x8x128xf32>
      %76 = vector.shape_cast %75 : vector<1x8x128xf32> to vector<8x128xf32>
      %77 = vector.shape_cast %73 : vector<8x128xf32> to vector<1x8x128xf32>
      tpu.vector_store %arg4[%74, %c104, %c0_18], %77 {strides = array<i32>} : memref<8x128x128xf32, #tpu.memory_space<vmem>>, vector<1x8x128xf32>,
      %78 = vector.extract_strided_slice %7 {offsets = [0, 16], sizes = [8, 128], strides = [1, 1]} : vector<8x256xf32> to vector<8x128xf32>
      %79 = arith.index_cast %arg5 : i32 to index
      %c112 = arith.constant 112 : index
      %c0_19 = arith.constant 0 : index
      %80 = vector.load %arg4[%79, %c112, %c0_19] : memref<8x128x128xf32, #tpu.memory_space<vmem>>, vector<1x8x128xf32>
      %81 = vector.shape_cast %80 : vector<1x8x128xf32> to vector<8x128xf32>
      %82 = vector.shape_cast %78 : vector<8x128xf32> to vector<1x8x128xf32>
      tpu.vector_store %arg4[%79, %c112, %c0_19], %82 {strides = array<i32>} : memref<8x128x128xf32, #tpu.memory_space<vmem>>, vector<1x8x128xf32>,
      %83 = vector.extract_strided_slice %7 {offsets = [0, 8], sizes = [8, 128], strides = [1, 1]} : vector<8x256xf32> to vector<8x128xf32>
      %84 = arith.index_cast %arg5 : i32 to index
      %c120 = arith.constant 120 : index
      %c0_20 = arith.constant 0 : index
      %85 = vector.load %arg4[%84, %c120, %c0_20] : memref<8x128x128xf32, #tpu.memory_space<vmem>>, vector<1x8x128xf32>
      %86 = vector.shape_cast %85 : vector<1x8x128xf32> to vector<8x128xf32>
      %87 = vector.shape_cast %83 : vector<8x128xf32> to vector<1x8x128xf32>
      tpu.vector_store %arg4[%84, %c120, %c0_20], %87 {strides = array<i32>} : memref<8x128x128xf32, #tpu.memory_space<vmem>>, vector<1x8x128xf32>,
    }
    %c8_i32_0 = arith.constant 8 : i32
    return
  }
  func.func @transform_0(%arg0: i32, %arg1: i32) -> (i32, i32, i32) {
    %c1_i32 = arith.constant 1 : i32
    %0 = arith.addi %c1_i32, %arg1 : i32
    %1 = arith.subi %0, %arg0 : i32
    %c1_i32_0 = arith.constant 1 : i32
    %2 = arith.subi %1, %c1_i32_0 : i32
    %c0_i32 = arith.constant 0 : i32
    %c0_i32_1 = arith.constant 0 : i32
    %c0_i32_2 = arith.constant 0 : i32
    return %c0_i32, %c0_i32_1, %2 : i32, i32, i32
  }
  func.func @transform_1(%arg0: i32, %arg1: i32) -> (i32, i32, i32) {
    %c1_i32 = arith.constant 1 : i32
    %0 = arith.addi %c1_i32, %arg1 : i32
    %1 = arith.subi %0, %arg0 : i32
    %c0_i32 = arith.constant 0 : i32
    %c0_i32_0 = arith.constant 0 : i32
    %c0_i32_1 = arith.constant 0 : i32
    return %c0_i32, %c0_i32_0, %1 : i32, i32, i32
  }
  func.func @transform_2(%arg0: i32, %arg1: i32) -> (i32, i32, i32) {
    %c0_i32 = arith.constant 0 : i32
    %c0_i32_0 = arith.constant 0 : i32
    return %c0_i32, %arg0, %arg1 : i32, i32, i32
  }
}

</mosaic_0001>

<llo_original>
// kernel: tpu_custom_call.1
$region0: #{tpu_custom_call.1}
  #allocation0 [shape = 'u32[]', space=smem, size = 0x4, offset = 0x4, fixed_abs, tag = 'smem constant byte address 0x4 - core index']
  #allocation1 [shape = 'u32[72,128]{1,0:T(1,128)}', space=vmem, size = 0x9000, scoped, tag = 'internal scratch']
  %s0 = inlined_call_operand.hbm [shape: f32[8,8,256], index: 0, kind: input, shape index: {}]
  %s1 = inlined_call_operand.hbm [shape: f32[8,8,256], index: 1, kind: input, shape index: {}]
  %s2 = inlined_call_operand.hbm [shape: f32[8,128,128], index: 2, kind: output, shape index: {}]
  %s3 = sld [smem:[#allocation0]]
  $region33: #{tpu_custom_call.1} parent=0
    _
  %s5 = ssub.s32 1, %s3
  %s6 = scalar_select 0, %s5, %s3
  $region1: #{tpu_custom_call.1} parent=0
    #allocation2 [shape = 'u8[32768]{0}', space=vmem, size = 0x8000, scoped, tag = 'input window, operand 0, single buffered']
    #allocation3 [shape = 's32[1]{0}', space=sflag, size = 0x4, scoped, tag = 'scoped memory for tpu_custom_call.1']
    #allocation4 [shape = 's32[1]{0}', space=sflag, size = 0x4, scoped, tag = 'scoped memory for tpu_custom_call.1']
    #allocation5 [shape = 'u8[32768]{0}', space=vmem, size = 0x8000, scoped, tag = 'input window, operand 1, single buffered']
    #allocation6 [shape = 's32[1]{0}', space=sflag, size = 0x4, scoped, tag = 'scoped memory for tpu_custom_call.1']
    #allocation7 [shape = 'u8[524288]{0}', space=vmem, size = 0x80000, scoped, tag = 'output window, operand 0, single buffered']
    %7 = vsyncpa [#allocation3], 0
    %8 = vsyncpa [#allocation6], 0
    %9 = vsyncpa [#allocation4], 0
    // Predicated region
    $region2: #{tpu_custom_call.1} parent=1 // pred_check
      _
    $region3: #{tpu_custom_call.1} parent=1 // pred_check_branch
      %11 = sbr.rel (0) target = $region5
    $region4: #{tpu_custom_call.1} parent=1 // pred_region
      %s12 = sadd.s32 0, 1
      %s13 = ssub.s32 %s12, 0
      %s14 = ssub.s32 %s13, 1
      %16 = vsyncadd [#allocation3], 0
      %s17 = smul.addr %s14, 8
      %s18 = scalar_lea.hbm %s0, %s17
      %s19 = sshll.u32 %s18, 4
      %s20 = int_to_ptr.hbm [resolvable:$true] %s19
      %s21 = sshll.u32 [#allocation2], 4
      %s22 = int_to_ptr.vmem [resolvable:$true] %s21
      %27 = dma.hbm_to_vmem [thread:$0]  %s20, 1024, %s22, [#allocation3], 256, 128, 8
    $region5: #{tpu_custom_call.1} parent=1 // pred_fallthru
      _
    // Predicated region
    $region6: #{tpu_custom_call.1} parent=1 // pred_check
      _
    $region7: #{tpu_custom_call.1} parent=1 // pred_check_branch
      %29 = sbr.rel (0) target = $region9
    $region8: #{tpu_custom_call.1} parent=1 // pred_region
      %s30 = sadd.s32 0, 1
      %s31 = ssub.s32 %s30, 0
      %33 = vsyncadd [#allocation6], 0
      %s34 = smul.addr %s31, 8
      %s35 = scalar_lea.hbm %s1, %s34
      %s36 = sshll.u32 %s35, 4
      %s37 = int_to_ptr.hbm [resolvable:$true] %s36
      %s38 = sshll.u32 [#allocation5], 4
      %s39 = int_to_ptr.vmem [resolvable:$true] %s38
      %44 = dma.hbm_to_vmem [thread:$0]  %s37, 1024, %s39, [#allocation6], 256, 128, 8
    $region9: #{tpu_custom_call.1} parent=1 // pred_fallthru
      _
    // Predicated region
    $region10: #{tpu_custom_call.1} parent=1 // pred_check
      _
    $region11: #{tpu_custom_call.1} parent=1 // pred_check_branch
      %46 = sbr.rel (0) target = $region13
    $region12: #{tpu_custom_call.1} parent=1 // pred_region
      %48 = dma.done [#allocation3], 1024
    $region13: #{tpu_custom_call.1} parent=1 // pred_fallthru
      _
    // Predicated region
    $region14: #{tpu_custom_call.1} parent=1 // pred_check
      _
    $region15: #{tpu_custom_call.1} parent=1 // pred_check_branch
      %50 = sbr.rel (0) target = $region17
    $region16: #{tpu_custom_call.1} parent=1 // pred_region
      %52 = dma.done [#allocation6], 1024
    $region17: #{tpu_custom_call.1} parent=1 // pred_fallthru
      _
    %s53 = sadd.s32 0, 1
    %s54 = ssub.s32 %s53, 0
    %s55 = ssub.s32 %s54, 1
    %s56 = sadd.s32 0, 1
    %s57 = ssub.s32 %s56, 0
    loop: start=0, step=1, limit=8
    $region18: #{tpu_custom_call.1} parent=1 // loop_pre_header
      _
    $region19: #{tpu_custom_call.1} parent=1 // loop_header
      %s59 = sphi 0, %s63
      %p60 = scmp.ge.s32.totalorder %s59, 8
    $region20: #{tpu_custom_call.1} parent=1 // loop_header_branch
      %62 = sbr.rel (%p60) target = $region24
    $region21: #{tpu_custom_call.1} parent=1 // loop_body
      %s64 = smul.u32 %s59, 8
      %s65 = scalar_lea.vmem [#allocation2], %s64
      %v66 = vld [vmem:[%s65] sm:$0xff]
      %s67 = scalar_lea.vmem [#allocation5], %s64
      %v68 = vld [vmem:[%s67] sm:$0xff]
      %s69 = smul.u32 %s59, 128
      %s70 = scalar_lea.vmem [#allocation7], %s69
      %71 = vst [vmem:[%s70] sm:$0xff] %v68
      %74 = vrot.lane.b32.xlu0 %v66, 8
      %v75 = vpop.permute.xlu0 %74
      %76 = vrot.lane.b32.xlu0 %v68, 8
      %v77 = vpop.permute.xlu0 %76
      %vm78 = vcmask 64512
      %v79 = vsel %vm78, %v75, %v77
      %81 = vst [vmem:[%s70 + $0x8] sm:$0xff] %v79
      %82 = vrot.lane.b32.xlu0 %v66, 16
      %v83 = vpop.permute.xlu0 %82
      %84 = vrot.lane.b32.xlu0 %v68, 16
      %v85 = vpop.permute.xlu0 %84
      %vm86 = vcmask 130048
      %v87 = vsel %vm86, %v83, %v85
      %89 = vst [vmem:[%s70 + $0x10] sm:$0xff] %v87
      %90 = vrot.lane.b32.xlu0 %v66, 24
      %v91 = vpop.permute.xlu0 %90
      %92 = vrot.lane.b32.xlu0 %v68, 24
      %v93 = vpop.permute.xlu0 %92
      %vm94 = vcmask 195584
      %v95 = vsel %vm94, %v91, %v93
      %97 = vst [vmem:[%s70 + $0x18] sm:$0xff] %v95
      %98 = vrot.lane.b32.xlu0 %v66, 32
      %v99 = vpop.permute.xlu0 %98
      %100 = vrot.lane.b32.xlu0 %v68, 32
      %v101 = vpop.permute.xlu0 %100
      %vm102 = vcmask 261120
      %v103 = vsel %vm102, %v99, %v101
      %105 = vst [vmem:[%s70 + $0x20] sm:$0xff] %v103
      %106 = vrot.lane.b32.xlu0 %v66, 40
      %v107 = vpop.permute.xlu0 %106
      %108 = vrot.lane.b32.xlu0 %v68, 40
      %v109 = vpop.permute.xlu0 %108
      %vm110 = vcmask 326656
      %v111 = vsel %vm110, %v107, %v109
      %113 = vst [vmem:[%s70 + $0x28] sm:$0xff] %v111
      %114 = vrot.lane.b32.xlu0 %v66, 48
      %v115 = vpop.permute.xlu0 %114
      %116 = vrot.lane.b32.xlu0 %v68, 48
      %v117 = vpop.permute.xlu0 %116
      %vm118 = vcmask 392192
      %v119 = vsel %vm118, %v115, %v117
      %121 = vst [vmem:[%s70 + $0x30] sm:$0xff] %v119
      %122 = vrot.lane.b32.xlu0 %v66, 56
      %v123 = vpop.permute.xlu0 %122
      %124 = vrot.lane.b32.xlu0 %v68, 56
      %v125 = vpop.permute.xlu0 %124
      %vm126 = vcmask 457728
      %v127 = vsel %vm126, %v123, %v125
      %129 = vst [vmem:[%s70 + $0x38] sm:$0xff] %v127
      %130 = vrot.lane.b32.xlu0 %v66, 64
      %v131 = vpop.permute.xlu0 %130
      %132 = vrot.lane.b32.xlu0 %v68, 64
      %v133 = vpop.permute.xlu0 %132
      %vm134 = vcmask 523264
      %v135 = vsel %vm134, %v131, %v133
      %137 = vst [vmem:[%s70 + $0x40] sm:$0xff] %v135
      %138 = vrot.lane.b32.xlu0 %v66, 72
      %v139 = vpop.permute.xlu0 %138
      %140 = vrot.lane.b32.xlu0 %v68, 72
      %v141 = vpop.permute.xlu0 %140
      %vm142 = vcmask 588800
      %v143 = vsel %vm142, %v139, %v141
      %145 = vst [vmem:[%s70 + $0x48] sm:$0xff] %v143
      %146 = vrot.lane.b32.xlu0 %v66, 80
      %v147 = vpop.permute.xlu0 %146
      %148 = vrot.lane.b32.xlu0 %v68, 80
      %v149 = vpop.permute.xlu0 %148
      %vm150 = vcmask 654336
      %v151 = vsel %vm150, %v147, %v149
      %153 = vst [vmem:[%s70 + $0x50] sm:$0xff] %v151
      %154 = vrot.lane.b32.xlu0 %v66, 88
      %v155 = vpop.permute.xlu0 %154
      %156 = vrot.lane.b32.xlu0 %v68, 88
      %v157 = vpop.permute.xlu0 %156
      %vm158 = vcmask 719872
      %v159 = vsel %vm158, %v155, %v157
      %161 = vst [vmem:[%s70 + $0x58] sm:$0xff] %v159
      %162 = vrot.lane.b32.xlu0 %v66, 96
      %v163 = vpop.permute.xlu0 %162
      %164 = vrot.lane.b32.xlu0 %v68, 96
      %v165 = vpop.permute.xlu0 %164
      %vm166 = vcmask 785408
      %v167 = vsel %vm166, %v163, %v165
      %169 = vst [vmem:[%s70 + $0x60] sm:$0xff] %v167
      %170 = vrot.lane.b32.xlu0 %v66, 104
      %v171 = vpop.permute.xlu0 %170
      %172 = vrot.lane.b32.xlu0 %v68, 104
      %v173 = vpop.permute.xlu0 %172
      %vm174 = vcmask 850944
      %v175 = vsel %vm174, %v171, %v173
      %177 = vst [vmem:[%s70 + $0x68] sm:$0xff] %v175
      %178 = vrot.lane.b32.xlu0 %v66, 112
      %v179 = vpop.permute.xlu0 %178
      %180 = vrot.lane.b32.xlu0 %v68, 112
      %v181 = vpop.permute.xlu0 %180
      %vm182 = vcmask 916480
      %v183 = vsel %vm182, %v179, %v181
      %185 = vst [vmem:[%s70 + $0x70] sm:$0xff] %v183
      %186 = vrot.lane.b32.xlu0 %v66, 120
      %v187 = vpop.permute.xlu0 %186
      %188 = vrot.lane.b32.xlu0 %v68, 120
      %v189 = vpop.permute.xlu0 %188
      %vm190 = vcmask 982016
      %v191 = vsel %vm190, %v187, %v189
      %193 = vst [vmem:[%s70 + $0x78] sm:$0xff] %v191
    $region22: #{tpu_custom_call.1} parent=1 // loop_footer
      %s63 = sadd.s32 1, %s59
    $region23: #{tpu_custom_call.1} parent=1 // loop_footer_branch
      %58 = sbr.rel target = $region19
    $region24: #{tpu_custom_call.1} parent=1 // loop_exit
      _
    // Predicated region
    $region25: #{tpu_custom_call.1} parent=1 // pred_check
      _
    $region26: #{tpu_custom_call.1} parent=1 // pred_check_branch
      %195 = sbr.rel (0) target = $region28
    $region27: #{tpu_custom_call.1} parent=1 // pred_region
      %197 = vsyncadd [#allocation4], 0
      %s198 = sshll.u32 [#allocation7], 4
      %s199 = int_to_ptr.vmem [resolvable:$true] %s198
      %s200 = sshll.u32 %s2, 4
      %s201 = int_to_ptr.hbm [resolvable:$true] %s200
      %206 = dma.vmem_to_hbm [thread:$0]  %s199, 16384, %s201, [#allocation4], 128, 128, 8
    $region28: #{tpu_custom_call.1} parent=1 // pred_fallthru
      _
    // Predicated region
    $region29: #{tpu_custom_call.1} parent=1 // pred_check
      _
    $region30: #{tpu_custom_call.1} parent=1 // pred_check_branch
      %208 = sbr.rel (0) target = $region32
    $region31: #{tpu_custom_call.1} parent=1 // pred_region
      %210 = dma.done [#allocation4], 16384
    $region32: #{tpu_custom_call.1} parent=1 // pred_fallthru
      _
    %211 = vsyncpa [#allocation3], 1
    %212 = vsyncpa [#allocation6], 1
    %213 = vsyncpa [#allocation4], 1

</llo_original>
